<compile_context>
chip_gen: v5e
topology: v5e:2x2
jax: 0.10.0
libtpu: 0.0.40
codegen_flags: <defaults>
</compile_context>

<pallas_src>
import math

import jax
import jax.numpy as jnp
from jax import lax
from jax.experimental import pallas as pl
from jax.experimental.pallas import tpu as pltpu

_COLS = 128             # lane width
_MAX_TILE_ROWS = 8192   # 8192 x 128 f32 = 4 MiB/tile/input -> 16 MiB double-buffered (2 inputs)
_NUM_CORE_SPLITS = 2    # leading "parallel" grid axis (2 TCs on v7x; harmless elsewhere)


def _round_up(x, m):
    return (x + m - 1) // m * m


def _sublane_multiple(dtype):
    # packed sublane granularity: f32 -> 8, bf16 -> 16, int8/fp8 -> 32
    return max(8, 32 // jnp.dtype(dtype).itemsize)


def _to_lane2d(flat, sub):
    """Flatten -> zero-pad to a multiple of sub*128 -> (rows, 128) lane-dense layout."""
    n = flat.shape[0]
    padded = _round_up(n, sub * _COLS)
    if padded != n:
        flat = jnp.pad(flat, (0, padded - n))   # zeros contribute 0 to sum(x^2)
    return flat.reshape(padded // _COLS, _COLS)


def _make_kernel(rows, tile_rows, cols, tiles_per_core):
    def partial_sumsq(x):
        x = x.astype(jnp.float32)
        sq = x * x
        # Reduce the leading row-group axis -> (8, cols) vreg-sized partial
        # (chained VPU adds; no cross-lane work in the hot loop).
        return jnp.sum(sq.reshape(tile_rows // 8, 8, cols), axis=0)

    def kernel(xs_ref, xr_ref, out_s_ref, out_r_ref):
        c = pl.program_id(0)      # core-split axis ("parallel")
        i = pl.program_id(1)      # reduction axis ("arbitrary")

        @pl.when(i == 0)
        def _init():
            out_s_ref[...] = jnp.zeros_like(out_s_ref)
            out_r_ref[...] = jnp.zeros_like(out_r_ref)

        # Intended (unclamped) global row offset of this tile; int32-safe since
        # it is a row index (<= rows + tile_rows), not a flat element index.
        start_row = (c * tiles_per_core + i) * tile_rows

        @pl.when(start_row + tile_rows <= rows)
        def _full_tile():         # fast path: no per-element mask / index math
            out_s_ref[...] += partial_sumsq(xs_ref[...])
            out_r_ref[...] += partial_sumsq(xr_ref[...])

        @pl.when(start_row + tile_rows > rows)
        def _tail_tile():         # ragged last block / clamped duplicate tiles only
            r = lax.broadcasted_iota(jnp.int32, (tile_rows, cols), 0)
            keep = (start_row + r) < rows
            xs = jnp.where(keep, xs_ref[...].astype(jnp.float32), 0.0)
            xr = jnp.where(keep, xr_ref[...].astype(jnp.float32), 0.0)
            out_s_ref[...] += partial_sumsq(xs)
            out_r_ref[...] += partial_sumsq(xr)

    return kernel


def _sumsq_pallas(x2d, r2d):
    """Returns (sum(x2d^2), sum(r2d^2)) over the valid rows, as f32 scalars."""
    rows, cols = x2d.shape
    tile_rows = min(_MAX_TILE_ROWS, rows)          # rows is a multiple of the sublane pack
    total_tiles = pl.cdiv(rows, tile_rows)
    tiles_per_core = pl.cdiv(total_tiles, _NUM_CORE_SPLITS)

    def in_index(c, i):
        # Clamp to stay in bounds; clamped duplicate tiles are masked in-kernel.
        return (jnp.minimum(c * tiles_per_core + i, total_tiles - 1), 0)

    def out_index(c, i):
        return (c, 0, 0)

    kernel = _make_kernel(rows, tile_rows, cols, tiles_per_core)
    nbytes = rows * cols * (x2d.dtype.itemsize + r2d.dtype.itemsize)

    out_s, out_r = pl.pallas_call(
        kernel,
        out_shape=(
            jax.ShapeDtypeStruct((_NUM_CORE_SPLITS, 8, cols), jnp.float32),
            jax.ShapeDtypeStruct((_NUM_CORE_SPLITS, 8, cols), jnp.float32),
        ),
        grid=(_NUM_CORE_SPLITS, tiles_per_core),
        in_specs=[
            pl.BlockSpec((tile_rows, cols), in_index),
            pl.BlockSpec((tile_rows, cols), in_index),
        ],
        out_specs=(
            pl.BlockSpec((None, 8, cols), out_index),   # per-core (8,128) accumulator
            pl.BlockSpec((None, 8, cols), out_index),
        ),
        compiler_params=pltpu.CompilerParams(
            dimension_semantics=("parallel", "arbitrary"),
            vmem_limit_bytes=40 * 1024 * 1024,
        ),
        cost_estimate=pl.CostEstimate(
            flops=4 * rows * cols,
            transcendentals=0,
            bytes_accessed=nbytes + 2 * _NUM_CORE_SPLITS * 8 * cols * 4,
        ),
    )(x2d, r2d)

    # Tiny final reduction (2 x 8 x 128 each) + scaling done outside the kernel.
    return jnp.sum(out_s), jnp.sum(out_r)


class Loss:
    """JAX/Pallas port of iin.losses.iin.Loss (stateless; config unused in forward)."""

    def __init__(self, config=None):
        self.config = config

    def forward(self, sample, logdet, global_step, *, rng_key):
        del global_step
        assert logdet.ndim == 1, "logdet must be 1-D (B,)"
        B = sample.shape[0]
        n = int(math.prod(sample.shape))

        ref_dtype = (sample.dtype if jnp.issubdtype(sample.dtype, jnp.floating)
                     else jnp.float32)
        reference = jax.random.normal(rng_key, (n,), dtype=ref_dtype)

        sub = _sublane_multiple(sample.dtype)
        x2d = _to_lane2d(sample.reshape(-1), sub)
        r2d = _to_lane2d(reference, sub)

        sum_sq_sample, sum_sq_ref = _sumsq_pallas(x2d, r2d)

        half_inv_b = 0.5 / B
        nll_loss = sum_sq_sample * half_inv_b
        reference_nll_loss = sum_sq_ref * half_inv_b
        nlogdet_loss = -jnp.mean(logdet.astype(jnp.float32))
        loss = nll_loss + nlogdet_loss

        log = {
            "images": {},
            "scalars": {
                "loss": loss,
                "reference_nll_loss": reference_nll_loss,
                "nlogdet_loss": nlogdet_loss,
                "nll_loss": nll_loss,
            },
        }

        def train_op():
            pass

        return loss, log, train_op

    __call__ = forward


def _check_case(shape, key):
    k_sample, k_logdet, k_ref = jax.random.split(key, 3)
    B = shape[0]
    n = int(math.prod(shape))

    sample = jax.random.normal(k_sample, shape, dtype=jnp.float32)
    logdet = jax.random.normal(k_logdet, (B,), dtype=jnp.float32)

    loss_mod = Loss(config={})
    loss, log, train_op = loss_mod(sample, logdet, 0, rng_key=k_ref)
    loss = jax.block_until_ready(loss)

    # Deterministic pieces vs pure-JAX reference.
    axes = tuple(range(1, len(shape)))
    ref_nll_loss = jnp.mean(0.5 * jnp.sum(sample.astype(jnp.float32) ** 2, axis=axes))
    ref_nlogdet = -jnp.mean(logdet)
    ref_loss = ref_nll_loss + ref_nlogdet
    assert jnp.allclose(log["scalars"]["nll_loss"], ref_nll_loss, rtol=1e-4, atol=1e-3), (
        log["scalars"]["nll_loss"], ref_nll_loss)
    assert jnp.allclose(log["scalars"]["nlogdet_loss"], ref_nlogdet, rtol=1e-5, atol=1e-5)
    assert jnp.allclose(loss, ref_loss, rtol=1e-4, atol=1e-3), (loss, ref_loss)

    # Reference randn_like statistic: recompute exactly with the same key/shape/dtype.
    ref_tensor = jax.random.normal(k_ref, (n,), dtype=jnp.float32)
    expected_ref = 0.5 * jnp.sum(ref_tensor ** 2) / B
    got_ref = log["scalars"]["reference_nll_loss"]
    assert math.isfinite(float(got_ref)), got_ref
    assert jnp.allclose(got_ref, expected_ref, rtol=1e-4, atol=1e-3), (got_ref, expected_ref)

    train_op()  # no-op, mirrors the torch module


if __name__ == "__main__":
    key = jax.random.PRNGKey(0)
    k1, k2 = jax.random.split(key, 2)

    # NCHW, matching PyTorch conventions.
    _check_case((2, 4, 16, 16), k1)   # lane/sublane aligned (2048 elements)
    _check_case((2, 3, 5, 7), k2)     # misaligned -> exercises pad + masked tile path

    print("KERNEL_OK")
</pallas_src>

<mosaic_0001>
module attributes {stable_mosaic.version = 11 : i64} {
  func.func @kernel(%arg0: i32, %arg1: i32, %arg2: memref<16x128xf32, #tpu.memory_space<vmem>>, %arg3: memref<16x128xf32, #tpu.memory_space<vmem>>, %arg4: memref<1x8x128xf32, #tpu.memory_space<vmem>>, %arg5: memref<1x8x128xf32, #tpu.memory_space<vmem>>) attributes {dimension_semantics = [#tpu.dimension_semantics<parallel>, #tpu.dimension_semantics<arbitrary>], iteration_bounds = array<i64: 2, 1>, scalar_prefetch = 0 : i64, scratch_operands = 0 : i64, tpu.core_type = #tpu.core_type<tc>, window_params = [{transform_indices = @transform_0, window_bounds = array<i64: 16, 128>}, {transform_indices = @transform_1, window_bounds = array<i64: 16, 128>}, {transform_indices = @transform_2, window_bounds = array<i64: 1, 8, 128>}, {transform_indices = @transform_3, window_bounds = array<i64: 1, 8, 128>}]} {
    %c0_i32 = arith.constant 0 : i32
    %0 = arith.cmpi eq, %arg1, %c0_i32 : i32
    %1 = arith.extui %0 : i1 to i32
    %c0_i32_0 = arith.constant 0 : i32
    %2 = arith.cmpi ne, %1, %c0_i32_0 : i32
    scf.if %2 {
      %cst = arith.constant 0.000000e+00 : f32
      %14 = vector.broadcast %cst : f32 to vector<8x128xf32>
      %c0 = arith.constant 0 : index
      %c0_7 = arith.constant 0 : index
      %c0_8 = arith.constant 0 : index
      %15 = vector.load %arg4[%c0, %c0_7, %c0_8] : memref<1x8x128xf32, #tpu.memory_space<vmem>>, vector<1x8x128xf32>
      %16 = vector.shape_cast %15 : vector<1x8x128xf32> to vector<8x128xf32>
      %17 = vector.shape_cast %14 : vector<8x128xf32> to vector<1x8x128xf32>
      tpu.vector_store %arg4[%c0, %c0_7, %c0_8], %17 {strides = array<i32>} : memref<1x8x128xf32, #tpu.memory_space<vmem>>, vector<1x8x128xf32>,
      %cst_9 = arith.constant 0.000000e+00 : f32
      %18 = vector.broadcast %cst_9 : f32 to vector<8x128xf32>
      %c0_10 = arith.constant 0 : index
      %c0_11 = arith.constant 0 : index
      %c0_12 = arith.constant 0 : index
      %19 = vector.load %arg5[%c0_10, %c0_11, %c0_12] : memref<1x8x128xf32, #tpu.memory_space<vmem>>, vector<1x8x128xf32>
      %20 = vector.shape_cast %19 : vector<1x8x128xf32> to vector<8x128xf32>
      %21 = vector.shape_cast %18 : vector<8x128xf32> to vector<1x8x128xf32>
      tpu.vector_store %arg5[%c0_10, %c0_11, %c0_12], %21 {strides = array<i32>} : memref<1x8x128xf32, #tpu.memory_space<vmem>>, vector<1x8x128xf32>,
    } else {
    }
    %c1_i32 = arith.constant 1 : i32
    %3 = arith.muli %arg0, %c1_i32 : i32
    %4 = arith.addi %3, %arg1 : i32
    %c16_i32 = arith.constant 16 : i32
    %5 = arith.muli %4, %c16_i32 : i32
    %c16_i32_1 = arith.constant 16 : i32
    %6 = arith.addi %5, %c16_i32_1 : i32
    %c16_i32_2 = arith.constant 16 : i32
    %7 = arith.cmpi sle, %6, %c16_i32_2 : i32
    %8 = arith.extui %7 : i1 to i32
    %c0_i32_3 = arith.constant 0 : i32
    %9 = arith.cmpi ne, %8, %c0_i32_3 : i32
    scf.if %9 {
      %c0 = arith.constant 0 : index
      %c0_7 = arith.constant 0 : index
      %c0_8 = arith.constant 0 : index
      %14 = vector.load %arg4[%c0, %c0_7, %c0_8] : memref<1x8x128xf32, #tpu.memory_space<vmem>>, vector<1x8x128xf32>
      %15 = vector.shape_cast %14 : vector<1x8x128xf32> to vector<8x128xf32>
      %c0_9 = arith.constant 0 : index
      %c0_10 = arith.constant 0 : index
      %16 = vector.load %arg2[%c0_9, %c0_10] : memref<16x128xf32, #tpu.memory_space<vmem>>, vector<16x128xf32>
      %17 = arith.mulf %16, %16 : vector<16x128xf32>
      %18 = vector.shape_cast %17 : vector<16x128xf32> to vector<2x8x128xf32>
      %cst = arith.constant dense<0.000000e+00> : vector<8x128xf32>
      %19 = vector.multi_reduction <add>, %18, %cst [0] : vector<2x8x128xf32> to vector<8x128xf32>
      %20 = arith.addf %15, %19 : vector<8x128xf32>
      %c0_11 = arith.constant 0 : index
      %c0_12 = arith.constant 0 : index
      %c0_13 = arith.constant 0 : index
      %21 = vector.load %arg4[%c0_11, %c0_12, %c0_13] : memref<1x8x128xf32, #tpu.memory_space<vmem>>, vector<1x8x128xf32>
      %22 = vector.shape_cast %21 : vector<1x8x128xf32> to vector<8x128xf32>
      %23 = vector.shape_cast %20 : vector<8x128xf32> to vector<1x8x128xf32>
      tpu.vector_store %arg4[%c0_11, %c0_12, %c0_13], %23 {strides = array<i32>} : memref<1x8x128xf32, #tpu.memory_space<vmem>>, vector<1x8x128xf32>,
      %c0_14 = arith.constant 0 : index
      %c0_15 = arith.constant 0 : index
      %c0_16 = arith.constant 0 : index
      %24 = vector.load %arg5[%c0_14, %c0_15, %c0_16] : memref<1x8x128xf32, #tpu.memory_space<vmem>>, vector<1x8x128xf32>
      %25 = vector.shape_cast %24 : vector<1x8x128xf32> to vector<8x128xf32>
      %c0_17 = arith.constant 0 : index
      %c0_18 = arith.constant 0 : index
      %26 = vector.load %arg3[%c0_17, %c0_18] : memref<16x128xf32, #tpu.memory_space<vmem>>, vector<16x128xf32>
      %27 = arith.mulf %26, %26 : vector<16x128xf32>
      %28 = vector.shape_cast %27 : vector<16x128xf32> to vector<2x8x128xf32>
      %cst_19 = arith.constant dense<0.000000e+00> : vector<8x128xf32>
      %29 = vector.multi_reduction <add>, %28, %cst_19 [0] : vector<2x8x128xf32> to vector<8x128xf32>
      %30 = arith.addf %25, %29 : vector<8x128xf32>
      %c0_20 = arith.constant 0 : index
      %c0_21 = arith.constant 0 : index
      %c0_22 = arith.constant 0 : index
      %31 = vector.load %arg5[%c0_20, %c0_21, %c0_22] : memref<1x8x128xf32, #tpu.memory_space<vmem>>, vector<1x8x128xf32>
      %32 = vector.shape_cast %31 : vector<1x8x128xf32> to vector<8x128xf32>
      %33 = vector.shape_cast %30 : vector<8x128xf32> to vector<1x8x128xf32>
      tpu.vector_store %arg5[%c0_20, %c0_21, %c0_22], %33 {strides = array<i32>} : memref<1x8x128xf32, #tpu.memory_space<vmem>>, vector<1x8x128xf32>,
    } else {
    }
    %c16_i32_4 = arith.constant 16 : i32
    %10 = arith.addi %5, %c16_i32_4 : i32
    %c16_i32_5 = arith.constant 16 : i32
    %11 = arith.cmpi sgt, %10, %c16_i32_5 : i32
    %12 = arith.extui %11 : i1 to i32
    %c0_i32_6 = arith.constant 0 : i32
    %13 = arith.cmpi ne, %12, %c0_i32_6 : i32
    scf.if %13 {
      %14 = tpu.iota {dimensions = array<i32: 0>} : vector<16x128xi32>
      %15 = vector.broadcast %5 : i32 to vector<16x128xi32>
      %16 = arith.addi %15, %14 : vector<16x128xi32>
      %c16_i32_7 = arith.constant 16 : i32
      %17 = vector.broadcast %c16_i32_7 : i32 to vector<16x128xi32>
      %18 = arith.cmpi slt, %16, %17 : vector<16x128xi32>
      %c0 = arith.constant 0 : index
      %c0_8 = arith.constant 0 : index
      %19 = vector.load %arg2[%c0, %c0_8] : memref<16x128xf32, #tpu.memory_space<vmem>>, vector<16x128xf32>
      %cst = arith.constant 0.000000e+00 : f32
      %20 = vector.broadcast %cst : f32 to vector<16x128xf32>
      %21 = arith.select %18, %19, %20 : vector<16x128xi1>, vector<16x128xf32>
      %c0_9 = arith.constant 0 : index
      %c0_10 = arith.constant 0 : index
      %22 = vector.load %arg3[%c0_9, %c0_10] : memref<16x128xf32, #tpu.memory_space<vmem>>, vector<16x128xf32>
      %cst_11 = arith.constant 0.000000e+00 : f32
      %23 = vector.broadcast %cst_11 : f32 to vector<16x128xf32>
      %24 = arith.select %18, %22, %23 : vector<16x128xi1>, vector<16x128xf32>
      %c0_12 = arith.constant 0 : index
      %c0_13 = arith.constant 0 : index
      %c0_14 = arith.constant 0 : index
      %25 = vector.load %arg4[%c0_12, %c0_13, %c0_14] : memref<1x8x128xf32, #tpu.memory_space<vmem>>, vector<1x8x128xf32>
      %26 = vector.shape_cast %25 : vector<1x8x128xf32> to vector<8x128xf32>
      %27 = arith.mulf %21, %21 : vector<16x128xf32>
      %28 = vector.shape_cast %27 : vector<16x128xf32> to vector<2x8x128xf32>
      %cst_15 = arith.constant dense<0.000000e+00> : vector<8x128xf32>
      %29 = vector.multi_reduction <add>, %28, %cst_15 [0] : vector<2x8x128xf32> to vector<8x128xf32>
      %30 = arith.addf %26, %29 : vector<8x128xf32>
      %c0_16 = arith.constant 0 : index
      %c0_17 = arith.constant 0 : index
      %c0_18 = arith.constant 0 : index
      %31 = vector.load %arg4[%c0_16, %c0_17, %c0_18] : memref<1x8x128xf32, #tpu.memory_space<vmem>>, vector<1x8x128xf32>
      %32 = vector.shape_cast %31 : vector<1x8x128xf32> to vector<8x128xf32>
      %33 = vector.shape_cast %30 : vector<8x128xf32> to vector<1x8x128xf32>
      tpu.vector_store %arg4[%c0_16, %c0_17, %c0_18], %33 {strides = array<i32>} : memref<1x8x128xf32, #tpu.memory_space<vmem>>, vector<1x8x128xf32>,
      %c0_19 = arith.constant 0 : index
      %c0_20 = arith.constant 0 : index
      %c0_21 = arith.constant 0 : index
      %34 = vector.load %arg5[%c0_19, %c0_20, %c0_21] : memref<1x8x128xf32, #tpu.memory_space<vmem>>, vector<1x8x128xf32>
      %35 = vector.shape_cast %34 : vector<1x8x128xf32> to vector<8x128xf32>
      %36 = arith.mulf %24, %24 : vector<16x128xf32>
      %37 = vector.shape_cast %36 : vector<16x128xf32> to vector<2x8x128xf32>
      %cst_22 = arith.constant dense<0.000000e+00> : vector<8x128xf32>
      %38 = vector.multi_reduction <add>, %37, %cst_22 [0] : vector<2x8x128xf32> to vector<8x128xf32>
      %39 = arith.addf %35, %38 : vector<8x128xf32>
      %c0_23 = arith.constant 0 : index
      %c0_24 = arith.constant 0 : index
      %c0_25 = arith.constant 0 : index
      %40 = vector.load %arg5[%c0_23, %c0_24, %c0_25] : memref<1x8x128xf32, #tpu.memory_space<vmem>>, vector<1x8x128xf32>
      %41 = vector.shape_cast %40 : vector<1x8x128xf32> to vector<8x128xf32>
      %42 = vector.shape_cast %39 : vector<8x128xf32> to vector<1x8x128xf32>
      tpu.vector_store %arg5[%c0_23, %c0_24, %c0_25], %42 {strides = array<i32>} : memref<1x8x128xf32, #tpu.memory_space<vmem>>, vector<1x8x128xf32>,
    } else {
    }
    return
  }
  func.func @transform_0(%arg0: i32, %arg1: i32) -> (i32, i32) {
    %c1_i32 = arith.constant 1 : i32
    %0 = arith.muli %arg0, %c1_i32 : i32
    %1 = arith.addi %0, %arg1 : i32
    %c0_i32 = arith.constant 0 : i32
    %2 = arith.minsi %1, %c0_i32 : i32
    %c0_i32_0 = arith.constant 0 : i32
    %c0_i32_1 = arith.constant 0 : i32
    return %2, %c0_i32_0 : i32, i32
  }
  func.func @transform_1(%arg0: i32, %arg1: i32) -> (i32, i32) {
    %c1_i32 = arith.constant 1 : i32
    %0 = arith.muli %arg0, %c1_i32 : i32
    %1 = arith.addi %0, %arg1 : i32
    %c0_i32 = arith.constant 0 : i32
    %2 = arith.minsi %1, %c0_i32 : i32
    %c0_i32_0 = arith.constant 0 : i32
    %c0_i32_1 = arith.constant 0 : i32
    return %2, %c0_i32_0 : i32, i32
  }
  func.func @transform_2(%arg0: i32, %arg1: i32) -> (i32, i32, i32) {
    %c0_i32 = arith.constant 0 : i32
    %c0_i32_0 = arith.constant 0 : i32
    %c0_i32_1 = arith.constant 0 : i32
    return %arg0, %c0_i32, %c0_i32_0 : i32, i32, i32
  }
  func.func @transform_3(%arg0: i32, %arg1: i32) -> (i32, i32, i32) {
    %c0_i32 = arith.constant 0 : i32
    %c0_i32_0 = arith.constant 0 : i32
    %c0_i32_1 = arith.constant 0 : i32
    return %arg0, %c0_i32, %c0_i32_0 : i32, i32, i32
  }
}

</mosaic_0001>

<llo_original>
// kernel: tpu_custom_call.1
$region0: #{tpu_custom_call.1}
  #allocation0 [shape = 'u32[]', space=smem, size = 0x4, offset = 0x4, fixed_abs, tag = 'smem constant byte address 0x4 - core index']
  #allocation1 [shape = 'u32[72,128]{1,0:T(1,128)}', space=vmem, size = 0x9000, scoped, tag = 'internal scratch']
  %s0 = inlined_call_operand.hbm [shape: f32[16,128], index: 0, kind: input, shape index: {}]
  %s1 = inlined_call_operand.hbm [shape: f32[16,128], index: 1, kind: input, shape index: {}]
  %s2 = inlined_call_operand.hbm [shape: f32[2,8,128], index: 2, kind: output, shape index: {0}]
  %s3 = inlined_call_operand.hbm [shape: f32[2,8,128], index: 3, kind: output, shape index: {1}]
  %4 = xla_tuple %s2, %s3
  %s5 = sld [smem:[#allocation0]]
  $region69: #{tpu_custom_call.1} parent=0
    _
  %s7 = ssub.s32 1, %s5
  %s8 = scalar_select 0, %s7, %s5
  $region1: #{tpu_custom_call.1} parent=0
    #allocation2 [shape = 'u8[16384]{0}', space=vmem, size = 0x4000, scoped, tag = 'input window, operand 0']
    #allocation3 [shape = 's32[2]{0}', space=sflag, size = 0x8, scoped, tag = 'scoped memory for tpu_custom_call.1']
    #allocation4 [shape = 's32[2]{0}', space=sflag, size = 0x8, scoped, tag = 'scoped memory for tpu_custom_call.1']
    #allocation5 [shape = 'u8[16384]{0}', space=vmem, size = 0x4000, scoped, tag = 'input window, operand 1']
    #allocation6 [shape = 's32[2]{0}', space=sflag, size = 0x8, scoped, tag = 'scoped memory for tpu_custom_call.1']
    #allocation7 [shape = 'u8[8192]{0}', space=vmem, size = 0x2000, scoped, tag = 'output window, operand 0']
    #allocation8 [shape = 'u8[8192]{0}', space=vmem, size = 0x2000, scoped, tag = 'output window, operand 1']
    #allocation9 [shape = 's32[2]{0}', space=sflag, size = 0x8, scoped, tag = 'scoped memory for tpu_custom_call.1']
    %9 = vsyncpa [#allocation3], 0
    %s10 = scalar_lea.sflag [#allocation3], 1
    %11 = vsyncpa %s10, 0
    %12 = vsyncpa [#allocation6], 0
    %s13 = scalar_lea.sflag [#allocation6], 1
    %14 = vsyncpa %s13, 0
    %15 = vsyncpa [#allocation4], 0
    %s16 = scalar_lea.sflag [#allocation4], 1
    %17 = vsyncpa %s16, 0
    %18 = vsyncpa [#allocation9], 0
    %s19 = scalar_lea.sflag [#allocation9], 1
    %20 = vsyncpa %s19, 0
    loop: start=0, step=1, limit=4
    $region2: #{tpu_custom_call.1} parent=1 // loop_pre_header
      _
    $region3: #{tpu_custom_call.1} parent=1 // loop_header
      %s22 = sphi 0, %s26
      %p23 = scmp.ge.s32.totalorder %s22, 4
      %s29 = sphi 0, %s41
      %s30 = sphi 0, %s37
      %s31 = sphi 0, %s29
      %s32 = sphi 0, %s30
      %s33 = sphi 0, %s31
      %s34 = sphi 0, %s32
      %s50 = sphi 0, %s52
      %s53 = sphi 0, %s50
      %s54 = sphi 0, %s53
      %s70 = sphi 0, %s54
      %s82 = sphi 0, %s84
      %s85 = sphi 0, %s82
      %s86 = sphi 0, %s85
      %s102 = sphi 0, %s86
      %s108 = sphi 0, %s110
      %s111 = sphi 0, %s108
      %s112 = sphi 0, %s111
      %s128 = sphi 0, %s112
      %s134 = sphi 0, %s136
      %s137 = sphi 0, %s134
      %s138 = sphi 0, %s137
      %s154 = sphi 0, %s138
    $region4: #{tpu_custom_call.1} parent=1 // loop_header_branch
      %25 = sbr.rel (%p23) target = $region8
    $region5: #{tpu_custom_call.1} parent=1 // loop_body
      %s27 = ssub.s32 %s22, 1
      %s28 = ssub.s32 %s22, 2
      %s35 = sadd.s32 1, %s30
      %p36 = scmp.ge.s32.totalorder %s35, 1
      %s37 = scalar_select %p36, 0, %s35
      %s38 = sadd.s32 1, %s29
      %s39 = scalar_select %p36, %s38, %s29
      %p40 = scmp.ge.s32.totalorder %s39, 2
      %s41 = scalar_select %p40, 0, %s39
      %s42 = sadd.s32 %s29, %s30
      %p43 = scmp.lt.s32.totalorder %s42, 0
      %s44 = scalar_select %p43, %s42, 0
      %s45 = sadd.s32 %s41, %s37
      %p46 = scmp.lt.s32.totalorder %s45, 0
      %s47 = scalar_select %p46, %s45, 0
      %s48 = ssub.s32 %s44, %s47
      %p49 = scmp.eq.s32.totalorder %s48, 0
      %s51 = sadd.s32 %s50, 1
      %s52 = scalar_select %p49, %s50, %s51
      %p55 = pneg %p49
      %p56 = scmp.eq.s32.totalorder %s22, 1
      %p57 = por %p55, %p56
      %p58 = scmp.ne.s32.totalorder %s50, %s53
      %p59 = scmp.eq.s32.totalorder %s22, 0
      %p60 = por %p58, %p59
      %p61 = scmp.ne.s32.totalorder %s50, %s53
      %p62 = scmp.eq.s32.totalorder %s27, 1
      %p63 = por %p61, %p62
      %p64 = scmp.ne.s32.totalorder %s53, %s54
      %p65 = scmp.eq.s32.totalorder %s27, 0
      %p66 = por %p64, %p65
      %p67 = scmp.ne.s32.totalorder %s53, %s54
      %p68 = scmp.eq.s32.totalorder %s28, 1
      %p69 = por %p67, %p68
      %p71 = scmp.ne.s32.totalorder %s54, %s70
      %p72 = scmp.eq.s32.totalorder %s28, 0
      %p73 = por %p71, %p72
      %s74 = sadd.s32 %s29, %s30
      %p75 = scmp.lt.s32.totalorder %s74, 0
      %s76 = scalar_select %p75, %s74, 0
      %s77 = sadd.s32 %s41, %s37
      %p78 = scmp.lt.s32.totalorder %s77, 0
      %s79 = scalar_select %p78, %s77, 0
      %s80 = ssub.s32 %s76, %s79
      %p81 = scmp.eq.s32.totalorder %s80, 0
      %s83 = sadd.s32 %s82, 1
      %s84 = scalar_select %p81, %s82, %s83
      %p87 = pneg %p81
      %p88 = scmp.eq.s32.totalorder %s22, 1
      %p89 = por %p87, %p88
      %p90 = scmp.ne.s32.totalorder %s82, %s85
      %p91 = scmp.eq.s32.totalorder %s22, 0
      %p92 = por %p90, %p91
      %p93 = scmp.ne.s32.totalorder %s82, %s85
      %p94 = scmp.eq.s32.totalorder %s27, 1
      %p95 = por %p93, %p94
      %p96 = scmp.ne.s32.totalorder %s85, %s86
      %p97 = scmp.eq.s32.totalorder %s27, 0
      %p98 = por %p96, %p97
      %p99 = scmp.ne.s32.totalorder %s85, %s86
      %p100 = scmp.eq.s32.totalorder %s28, 1
      %p101 = por %p99, %p100
      %p103 = scmp.ne.s32.totalorder %s86, %s102
      %p104 = scmp.eq.s32.totalorder %s28, 0
      %p105 = por %p103, %p104
      %s106 = ssub.s32 %s29, %s41
      %p107 = scmp.eq.s32.totalorder %s106, 0
      %s109 = sadd.s32 %s108, 1
      %s110 = scalar_select %p107, %s108, %s109
      %p113 = pneg %p107
      %p114 = scmp.eq.s32.totalorder %s22, 1
      %p115 = por %p113, %p114
      %p116 = scmp.ne.s32.totalorder %s108, %s111
      %p117 = scmp.eq.s32.totalorder %s22, 0
      %p118 = por %p116, %p117
      %p119 = scmp.ne.s32.totalorder %s108, %s111
      %p120 = scmp.eq.s32.totalorder %s27, 1
      %p121 = por %p119, %p120
      %p122 = scmp.ne.s32.totalorder %s111, %s112
      %p123 = scmp.eq.s32.totalorder %s27, 0
      %p124 = por %p122, %p123
      %p125 = scmp.ne.s32.totalorder %s111, %s112
      %p126 = scmp.eq.s32.totalorder %s28, 1
      %p127 = por %p125, %p126
      %p129 = scmp.ne.s32.totalorder %s112, %s128
      %p130 = scmp.eq.s32.totalorder %s28, 0
      %p131 = por %p129, %p130
      %s132 = ssub.s32 %s29, %s41
      %p133 = scmp.eq.s32.totalorder %s132, 0
      %s135 = sadd.s32 %s134, 1
      %s136 = scalar_select %p133, %s134, %s135
      %p139 = pneg %p133
      %p140 = scmp.eq.s32.totalorder %s22, 1
      %p141 = por %p139, %p140
      %p142 = scmp.ne.s32.totalorder %s134, %s137
      %p143 = scmp.eq.s32.totalorder %s22, 0
      %p144 = por %p142, %p143
      %p145 = scmp.ne.s32.totalorder %s134, %s137
      %p146 = scmp.eq.s32.totalorder %s27, 1
      %p147 = por %p145, %p146
      %p148 = scmp.ne.s32.totalorder %s137, %s138
      %p149 = scmp.eq.s32.totalorder %s27, 0
      %p150 = por %p148, %p149
      %p151 = scmp.ne.s32.totalorder %s137, %s138
      %p152 = scmp.eq.s32.totalorder %s28, 1
      %p153 = por %p151, %p152
      %p155 = scmp.ne.s32.totalorder %s138, %s154
      %p156 = scmp.eq.s32.totalorder %s28, 0
      %p157 = por %p155, %p156
      %p158 = scmp.le.s32.totalorder 1, %s22
      %p159 = scmp.lt.s32.totalorder %s22, 3
      %p160 = pnand %p158, %p159
      %p161 = pneg %p160
      // Predicated region
      $region9: #{tpu_custom_call.1} parent=5 // pred_check
        _
      $region10: #{tpu_custom_call.1} parent=5 // pred_check_branch
        %163 = sbr.rel (%p160) target = $region12
      $region11: #{tpu_custom_call.1} parent=5 // pred_region
        %s164 = ssub.s32 %s22, 1
      $region12: #{tpu_custom_call.1} parent=5 // pred_fallthru
        _
      %p165 = scmp.lt.s32.totalorder %s22, 2
      // Predicated region
      $region13: #{tpu_custom_call.1} parent=5 // pred_check
        %p166 = pneg %p165
      $region14: #{tpu_custom_call.1} parent=5 // pred_check_branch
        %168 = sbr.rel (%p166) target = $region16
      $region15: #{tpu_custom_call.1} parent=5 // pred_region
        // Predicated region
        $region17: #{tpu_custom_call.1} parent=15 // pred_check
          %p169 = pneg %p60
        $region18: #{tpu_custom_call.1} parent=15 // pred_check_branch
          %171 = sbr.rel (%p169) target = $region20
        $region19: #{tpu_custom_call.1} parent=15 // pred_region
          %s172 = sand.u32 %s50, 1
          %s173 = scalar_lea.sflag [#allocation3], %s172
          %s174 = sand.u32 %s50, 1
          %s175 = smul.addr %s174, 16
          %s176 = scalar_lea.vmem [#allocation2], %s175
          %s177 = sadd.s32 %s29, %s30
          %p178 = scmp.lt.s32.totalorder %s177, 0
          %s179 = scalar_select %p178, %s177, 0
          %s180 = smul.u32 2, %s179
          %182 = vsyncadd %s173, 0
          %s183 = smul.addr %s180, 8
          %s184 = scalar_lea.hbm %s0, %s183
          %s185 = sshll.u32 %s184, 4
          %s186 = int_to_ptr.hbm [resolvable:$true] %s185
          %s187 = sshll.u32 %s176, 4
          %s188 = int_to_ptr.vmem [resolvable:$true] %s187
          %193 = dma.hbm_to_vmem [thread:$0]  %s186, 256, %s188, %s173, 128, 128, 8
        $region20: #{tpu_custom_call.1} parent=15 // pred_fallthru
          _
        // Predicated region
        $region21: #{tpu_custom_call.1} parent=15 // pred_check
          %p194 = pneg %p92
        $region22: #{tpu_custom_call.1} parent=15 // pred_check_branch
          %196 = sbr.rel (%p194) target = $region24
        $region23: #{tpu_custom_call.1} parent=15 // pred_region
          %s197 = sand.u32 %s82, 1
          %s198 = scalar_lea.sflag [#allocation6], %s197
          %s199 = sand.u32 %s82, 1
          %s200 = smul.addr %s199, 16
          %s201 = scalar_lea.vmem [#allocation5], %s200
          %s202 = sadd.s32 %s29, %s30
          %p203 = scmp.lt.s32.totalorder %s202, 0
          %s204 = scalar_select %p203, %s202, 0
          %s205 = smul.u32 2, %s204
          %207 = vsyncadd %s198, 0
          %s208 = smul.addr %s205, 8
          %s209 = scalar_lea.hbm %s1, %s208
          %s210 = sshll.u32 %s209, 4
          %s211 = int_to_ptr.hbm [resolvable:$true] %s210
          %s212 = sshll.u32 %s201, 4
          %s213 = int_to_ptr.vmem [resolvable:$true] %s212
          %218 = dma.hbm_to_vmem [thread:$0]  %s211, 256, %s213, %s198, 128, 128, 8
        $region24: #{tpu_custom_call.1} parent=15 // pred_fallthru
          _
      $region16: #{tpu_custom_call.1} parent=5 // pred_fallthru
        _
      %p219 = scmp.le.s32.totalorder 1, %s22
      %p220 = scmp.lt.s32.totalorder %s22, 3
      %p221 = pnand %p219, %p220
      %p222 = pneg %p221
      // Predicated region
      $region25: #{tpu_custom_call.1} parent=5 // pred_check
        _
      $region26: #{tpu_custom_call.1} parent=5 // pred_check_branch
        %224 = sbr.rel (%p221) target = $region28
      $region27: #{tpu_custom_call.1} parent=5 // pred_region
        %s225 = ssub.s32 %s22, 1
        %s226 = sand.u32 %s53, 1
        %s227 = scalar_lea.sflag [#allocation3], %s226
        %s228 = sand.u32 %s53, 1
        %s229 = smul.addr %s228, 16
        %s230 = scalar_lea.vmem [#allocation2], %s229
        // Predicated region
        $region29: #{tpu_custom_call.1} parent=27 // pred_check
          %p231 = pneg %p66
        $region30: #{tpu_custom_call.1} parent=27 // pred_check_branch
          %233 = sbr.rel (%p231) target = $region32
        $region31: #{tpu_custom_call.1} parent=27 // pred_region
          %235 = dma.done %s227, 256
        $region32: #{tpu_custom_call.1} parent=27 // pred_fallthru
          _
        %s236 = sand.u32 %s85, 1
        %s237 = scalar_lea.sflag [#allocation6], %s236
        %s238 = sand.u32 %s85, 1
        %s239 = smul.addr %s238, 16
        %s240 = scalar_lea.vmem [#allocation5], %s239
        // Predicated region
        $region33: #{tpu_custom_call.1} parent=27 // pred_check
          %p241 = pneg %p98
        $region34: #{tpu_custom_call.1} parent=27 // pred_check_branch
          %243 = sbr.rel (%p241) target = $region36
        $region35: #{tpu_custom_call.1} parent=27 // pred_region
          %245 = dma.done %s237, 256
        $region36: #{tpu_custom_call.1} parent=27 // pred_fallthru
          _
        %s246 = sand.u32 %s53, 1
        %s247 = scalar_lea.sflag [#allocation3], %s246
        %s248 = sand.u32 %s53, 1
        %s249 = smul.addr %s248, 16
        %s250 = scalar_lea.vmem [#allocation2], %s249
        %p251 = pneg %p66
        %p252 = pneg %p63
        %s253 = sand.u32 %s85, 1
        %s254 = scalar_lea.sflag [#allocation6], %s253
        %s255 = sand.u32 %s85, 1
        %s256 = smul.addr %s255, 16
        %s257 = scalar_lea.vmem [#allocation5], %s256
        %p258 = pneg %p98
        %p259 = pneg %p95
        %p260 = pneg %p124
        %p261 = pneg %p121
        %s262 = sand.u32 %s111, 1
        %s263 = scalar_lea.sflag [#allocation4], %s262
        %s264 = sand.u32 %s111, 1
        %s265 = smul.addr %s264, 8
        %s266 = scalar_lea.vmem [#allocation7], %s265
        %p267 = pneg %p150
        %p268 = pneg %p147
        %s269 = sand.u32 %s137, 1
        %s270 = scalar_lea.sflag [#allocation9], %s269
        %s271 = sand.u32 %s137, 1
        %s272 = smul.addr %s271, 8
        %s273 = scalar_lea.vmem [#allocation8], %s272
        %s274 = sadd.s32 %s31, %s32
        %p275 = scmp.lt.s32.totalorder %s274, 0
        %s276 = scalar_select %p275, %s274, 0
        %s277 = smul.u32 2, %s276
        %s278 = sadd.s32 %s31, %s32
        %p279 = scmp.lt.s32.totalorder %s278, 0
        %s280 = scalar_select %p279, %s278, 0
        %s281 = smul.u32 2, %s280
        %p282 = scmp.eq.s32.totalorder %s32, 0
        // Predicated region
        $region37: #{tpu_custom_call.1} parent=27 // pred_check
          %p283 = pneg %p282
        $region38: #{tpu_custom_call.1} parent=27 // pred_check_branch
          %285 = sbr.rel (%p283) target = $region40
        $region39: #{tpu_custom_call.1} parent=27 // pred_region
          %286 = vst [vmem:[%s266] sm:$0xff] 0.0
          %287 = vst [vmem:[%s273] sm:$0xff] 0.0
        $region40: #{tpu_custom_call.1} parent=27 // pred_fallthru
          _
        %s288 = sadd.s32 %s31, %s32
        %s289 = smul.u32 %s288, 16
        %s290 = sadd.s32 %s289, 16
        %p291 = scmp.le.s32.totalorder %s290, 16
        // Predicated region
        $region41: #{tpu_custom_call.1} parent=27 // pred_check
          %p292 = pneg %p291
        $region42: #{tpu_custom_call.1} parent=27 // pred_check_branch
          %294 = sbr.rel (%p292) target = $region44
        $region43: #{tpu_custom_call.1} parent=27 // pred_region
          %v295 = vld [vmem:[%s266] sm:$0xff]
          %v296 = vld [vmem:[%s230] sm:$0xff]
          %v297 = vld [vmem:[%s230 + $0x8] sm:$0xff]
          %v298 = vmul.f32 %v296, %v296
          %v299 = vmul.f32 %v297, %v297
          %v300 = vadd.f32 %v298, %v299
          %v301 = vadd.f32 %v295, %v300
          %302 = vst [vmem:[%s266] sm:$0xff] %v301
          %v303 = vld [vmem:[%s273] sm:$0xff]
          %v304 = vld [vmem:[%s240] sm:$0xff]
          %v305 = vld [vmem:[%s240 + $0x8] sm:$0xff]
          %v306 = vmul.f32 %v304, %v304
          %v307 = vmul.f32 %v305, %v305
          %v308 = vadd.f32 %v306, %v307
          %v309 = vadd.f32 %v303, %v308
          %310 = vst [vmem:[%s273] sm:$0xff] %v309
        $region44: #{tpu_custom_call.1} parent=27 // pred_fallthru
          _
        %p311 = scmp.gt.s32.totalorder %s290, 16
        // Predicated region
        $region45: #{tpu_custom_call.1} parent=27 // pred_check
          %p312 = pneg %p311
        $region46: #{tpu_custom_call.1} parent=27 // pred_check_branch
          %314 = sbr.rel (%p312) target = $region48
        $region47: #{tpu_custom_call.1} parent=27 // pred_region
          %v315 = vlaneseq
          %v316 = vshrl.u32 %v315, 7
          %v317 = vadd.s32 %v316, 8
          %v318 = vstv %s289
          %v319 = vadd.s32 %v318, %v316
          %v320 = vadd.s32 %v318, %v317
          %vm321 = vcmp.lt.s32.totalorder %v319, 16
          %vm322 = vcmp.lt.s32.totalorder %v320, 16
          %v323 = vld [vmem:[%s230] sm:$0xff]
          %v324 = vld [vmem:[%s230 + $0x8] sm:$0xff]
          %v325 = vsel %vm321, %v323, 0.0
          %v326 = vsel %vm322, %v324, 0.0
          %v327 = vld [vmem:[%s240] sm:$0xff]
          %v328 = vld [vmem:[%s240 + $0x8] sm:$0xff]
          %v329 = vsel %vm321, %v327, 0.0
          %v330 = vsel %vm322, %v328, 0.0
          %v331 = vld [vmem:[%s266] sm:$0xff]
          %v332 = vmul.f32 %v325, %v325
          %v333 = vmul.f32 %v326, %v326
          %v334 = vadd.f32 %v332, %v333
          %v335 = vadd.f32 %v331, %v334
          %336 = vst [vmem:[%s266] sm:$0xff] %v335
          %v337 = vld [vmem:[%s273] sm:$0xff]
          %v338 = vmul.f32 %v329, %v329
          %v339 = vmul.f32 %v330, %v330
          %v340 = vadd.f32 %v338, %v339
          %v341 = vadd.f32 %v337, %v340
          %342 = vst [vmem:[%s273] sm:$0xff] %v341
        $region48: #{tpu_custom_call.1} parent=27 // pred_fallthru
          _
        %s343 = sand.u32 %s111, 1
        %s344 = scalar_lea.sflag [#allocation4], %s343
        %s345 = sand.u32 %s111, 1
        %s346 = smul.addr %s345, 8
        %s347 = scalar_lea.vmem [#allocation7], %s346
        %s348 = sand.u32 %s137, 1
        %s349 = scalar_lea.sflag [#allocation9], %s348
        %s350 = sand.u32 %s137, 1
        %s351 = smul.addr %s350, 8
        %s352 = scalar_lea.vmem [#allocation8], %s351
        // Predicated region
        $region49: #{tpu_custom_call.1} parent=27 // pred_check
          %p353 = pneg %p121
        $region50: #{tpu_custom_call.1} parent=27 // pred_check_branch
          %355 = sbr.rel (%p353) target = $region52
        $region51: #{tpu_custom_call.1} parent=27 // pred_region
          %357 = vsyncadd %s344, 0
          %s358 = smul.addr %s31, 8
          %s359 = scalar_lea.hbm %s2, %s358
          %s361 = sshll.u32 %s347, 4
          %s362 = int_to_ptr.vmem [resolvable:$true] %s361
          %s363 = sshll.u32 %s359, 4
          %s364 = int_to_ptr.hbm [resolvable:$true] %s363
          %366 = dma.vmem_to_hbm [thread:$0]  %s362, 128, %s364, %s344
        $region52: #{tpu_custom_call.1} parent=27 // pred_fallthru
          _
        // Predicated region
        $region53: #{tpu_custom_call.1} parent=27 // pred_check
          %p367 = pneg %p147
        $region54: #{tpu_custom_call.1} parent=27 // pred_check_branch
          %369 = sbr.rel (%p367) target = $region56
        $region55: #{tpu_custom_call.1} parent=27 // pred_region
          %371 = vsyncadd %s349, 0
          %s372 = smul.addr %s31, 8
          %s373 = scalar_lea.hbm %s3, %s372
          %s375 = sshll.u32 %s352, 4
          %s376 = int_to_ptr.vmem [resolvable:$true] %s375
          %s377 = sshll.u32 %s373, 4
          %s378 = int_to_ptr.hbm [resolvable:$true] %s377
          %380 = dma.vmem_to_hbm [thread:$0]  %s376, 128, %s378, %s349
        $region56: #{tpu_custom_call.1} parent=27 // pred_fallthru
          _
      $region28: #{tpu_custom_call.1} parent=5 // pred_fallthru
        _
      %p381 = scmp.le.s32.totalorder 2, %s22
      // Predicated region
      $region57: #{tpu_custom_call.1} parent=5 // pred_check
        %p382 = pneg %p381
      $region58: #{tpu_custom_call.1} parent=5 // pred_check_branch
        %384 = sbr.rel (%p382) target = $region60
      $region59: #{tpu_custom_call.1} parent=5 // pred_region
        %s385 = ssub.s32 %s22, 2
        // Predicated region
        $region61: #{tpu_custom_call.1} parent=59 // pred_check
          %p386 = pneg %p127
        $region62: #{tpu_custom_call.1} parent=59 // pred_check_branch
          %388 = sbr.rel (%p386) target = $region64
        $region63: #{tpu_custom_call.1} parent=59 // pred_region
          %s389 = sand.u32 %s112, 1
          %s390 = scalar_lea.sflag [#allocation4], %s389
          %s391 = sand.u32 %s112, 1
          %s392 = smul.addr %s391, 8
          %s393 = scalar_lea.vmem [#allocation7], %s392
          %395 = dma.done %s390, 128
        $region64: #{tpu_custom_call.1} parent=59 // pred_fallthru
          _
        // Predicated region
        $region65: #{tpu_custom_call.1} parent=59 // pred_check
          %p396 = pneg %p153
        $region66: #{tpu_custom_call.1} parent=59 // pred_check_branch
          %398 = sbr.rel (%p396) target = $region68
        $region67: #{tpu_custom_call.1} parent=59 // pred_region
          %s399 = sand.u32 %s138, 1
          %s400 = scalar_lea.sflag [#allocation9], %s399
          %s401 = sand.u32 %s138, 1
          %s402 = smul.addr %s401, 8
          %s403 = scalar_lea.vmem [#allocation8], %s402
          %405 = dma.done %s400, 128
        $region68: #{tpu_custom_call.1} parent=59 // pred_fallthru
          _
      $region60: #{tpu_custom_call.1} parent=5 // pred_fallthru
        _
    $region6: #{tpu_custom_call.1} parent=1 // loop_footer
      %s26 = sadd.s32 1, %s22
    $region7: #{tpu_custom_call.1} parent=1 // loop_footer_branch
      %21 = sbr.rel target = $region3
    $region8: #{tpu_custom_call.1} parent=1 // loop_exit
      _
    %406 = vsyncpa [#allocation3], 1
    %s407 = scalar_lea.sflag [#allocation3], 1
    %408 = vsyncpa %s407, 1
    %409 = vsyncpa [#allocation6], 1
    %s410 = scalar_lea.sflag [#allocation6], 1
    %411 = vsyncpa %s410, 1
    %412 = vsyncpa [#allocation4], 1
    %s413 = scalar_lea.sflag [#allocation4], 1
    %414 = vsyncpa %s413, 1
    %415 = vsyncpa [#allocation9], 1
    %s416 = scalar_lea.sflag [#allocation9], 1
    %417 = vsyncpa %s416, 1

</llo_original>
